<compile_context>
chip_gen: v5e
topology: v5e:2x2
jax: 0.10.0
libtpu: 0.0.40
codegen_flags: <defaults>
</compile_context>

<pallas_src>
import functools

import jax
import jax.numpy as jnp
from jax.experimental import pallas as pl
from jax.experimental.pallas import tpu as pltpu

_LANE = 128
_SUB = 8

_cdiv = lambda a, b: -(-a // b)
_rup = lambda a, b: _cdiv(a, b) * b


def _sublane_req(*dtypes):
    """Sublane multiple required for the blocks' second-to-last dim (dtype packing)."""
    req = _SUB
    for dt in dtypes:
        isz = jnp.dtype(dt).itemsize
        req = max(req, _SUB * max(1, 4 // max(1, isz)))  # f32->8, bf16->16, int8/bool->32
    return req


def _target_block_bytes():
    """Per-input VMEM block budget (f32-equivalent bytes), scaled per TPU generation."""
    try:
        kind = jax.devices()[0].device_kind.lower()
    except Exception:
        kind = ""
    if "v5 lite" in kind or "v5lite" in kind or "v5e" in kind:
        return 2 * 1024 * 1024   # v5e: ~820 GB/s, 2 MiB steps already amortize overhead
    return 4 * 1024 * 1024        # v6e / v7x: larger steps to amortize ~0.35us/step


def _fold_rows(x, acc_h):
    """(tile_h, W) -> (acc_h, W): sum row groups with a short dependent-add chain."""
    tile_h, w = x.shape
    if tile_h == acc_h:
        return x
    if acc_h == 1:
        return jnp.sum(x, axis=0, keepdims=True)
    if tile_h % (8 * acc_h) == 0 and tile_h > 8 * acc_h:
        # Two-stage fold keeps the VPU add chain ~8x shorter (matters on v7x,
        # where the per-step DMA is short); neutral elsewhere.
        x = x.reshape(tile_h // (8 * acc_h), 8 * acc_h, w).sum(axis=0)
        tile_h = 8 * acc_h
    return x.reshape(tile_h // acc_h, acc_h, w).sum(axis=0)


def _l2_kernel(gt_ref, pred_ref, mask_ref, loss_sum_ref, mask_sum_ref,
               *, n_rows, tile_h, needs_tail, acc_h):
    h = pl.program_id(1)

    @pl.when(h == 0)
    def _init():
        loss_sum_ref[...] = jnp.zeros_like(loss_sum_ref)
        mask_sum_ref[...] = jnp.zeros_like(mask_sum_ref)

    # DMA in native dtype; cast in VMEM.
    gt = gt_ref[...].astype(jnp.float32)       # (C, tile_h, W)
    pred = pred_ref[...].astype(jnp.float32)   # (C, tile_h, W)
    m = mask_ref[...].astype(jnp.float32)      # (tile_h, W) -- mask channel 0

    # TODO(synk): reference asserts torch.isfinite(...) on inputs; skipped here.
    diff = pred - gt
    sq = jnp.sum(diff * diff, axis=0)          # (tile_h, W) channel-wise L2^2
    masked = jnp.sqrt(sq) * m                  # per-pixel norm * mask

    if needs_tail:
        # Last H-tile extends past the array: its trailing rows hold undefined
        # padding from the partial-block DMA -- zero them before accumulating.
        w = m.shape[-1]
        row = jax.lax.broadcasted_iota(jnp.int32, (tile_h, w), 0) + h * tile_h
        valid = row < n_rows
        m = jnp.where(valid, m, 0.0)
        masked = jnp.where(valid, masked, 0.0)

    # Accumulate directly into the VMEM-resident output blocks (pure VPU adds).
    loss_sum_ref[...] += _fold_rows(masked, acc_h)
    mask_sum_ref[...] += _fold_rows(m, acc_h)


def l2_loss(flow_gt, flow_pred, flow_mask, *, block_bytes=None):
    """Pallas equivalent of L2.forward.  Returns a scalar f32.

    Note: when no batch has valid pixels the PyTorch reference returns
    torch.zeros(1); here we return scalar 0.0 (same value, rank-0)."""
    B, Cg, H, W = flow_gt.shape
    assert Cg in (2, 3), flow_gt.shape
    assert flow_pred.shape[1] in (2, 3), flow_pred.shape
    assert flow_mask.shape[1] in (2, 3), flow_mask.shape
    Cp = flow_pred.shape[1]

    sub_req = _sublane_req(flow_gt.dtype, flow_pred.dtype, flow_mask.dtype)
    w_lanes = _rup(W, _LANE)
    if block_bytes is None:
        block_bytes = _target_block_bytes()

    # Balanced H-tiling; never pad or copy the inputs in the wrapper.
    if H < sub_req:
        tile_h, num_h = H, 1                      # full-dim block (always legal)
    else:
        cap = max(sub_req, (block_bytes // (Cg * w_lanes * 4)) // sub_req * sub_req)
        if cap >= H:
            tile_h, num_h = H, 1                  # single full-H block
        else:
            n0 = _cdiv(H, cap)
            tile_h = min(_rup(_cdiv(H, n0), sub_req), (H // sub_req) * sub_req)
            num_h = _cdiv(H, tile_h)
    needs_tail = (num_h * tile_h != H)            # handled in-kernel, not by padding
    acc_h = _SUB if tile_h % _SUB == 0 else 1

    kernel = functools.partial(_l2_kernel, n_rows=H, tile_h=tile_h,
                               needs_tail=needs_tail, acc_h=acc_h)

    isz = lambda a: jnp.dtype(a.dtype).itemsize
    cost = pl.CostEstimate(
        flops=B * H * W * (3 * Cg + 2),
        transcendentals=B * H * W,
        bytes_accessed=(B * H * W * (Cg * isz(flow_gt) + Cp * isz(flow_pred)
                                     + isz(flow_mask))
                        + 2 * B * acc_h * W * 4),
    )

    loss_sums, mask_sums = pl.pallas_call(
        kernel,
        out_shape=(
            jax.ShapeDtypeStruct((B, acc_h, W), jnp.float32),
            jax.ShapeDtypeStruct((B, acc_h, W), jnp.float32),
        ),
        grid_spec=pltpu.PrefetchScalarGridSpec(
            num_scalar_prefetch=0,
            grid=(B, num_h),
            in_specs=[
                pl.BlockSpec((pl.Squeezed(), Cg, tile_h, W),
                             lambda b, h: (b, 0, h, 0)),
                pl.BlockSpec((pl.Squeezed(), Cp, tile_h, W),
                             lambda b, h: (b, 0, h, 0)),
                # Mask channel 0 selected here (size-1 squeezed block on C axis);
                # no wrapper slice/cast -> no extra HBM pass.
                pl.BlockSpec((pl.Squeezed(), pl.Squeezed(), tile_h, W),
                             lambda b, h: (b, 0, h, 0)),
            ],
            out_specs=[
                pl.BlockSpec((pl.Squeezed(), acc_h, W), lambda b, h: (b, 0, 0)),
                pl.BlockSpec((pl.Squeezed(), acc_h, W), lambda b, h: (b, 0, 0)),
            ],
        ),
        compiler_params=pltpu.CompilerParams(
            dimension_semantics=("parallel", "arbitrary"),
            vmem_limit_bytes=32 * 1024 * 1024,
        ),
        cost_estimate=cost,
    )(flow_gt, flow_pred, flow_mask)

    loss_sum = jnp.sum(loss_sums, axis=(1, 2))    # (B,)  sum_hw(norm * mask)
    mask_sum = jnp.sum(mask_sums, axis=(1, 2))    # (B,)  num_valid_b

    valid = mask_sum > 0.0
    per_batch = jnp.where(valid, loss_sum / jnp.where(valid, mask_sum, 1.0), 0.0)
    num_valid = jnp.sum(valid.astype(jnp.float32))
    return jnp.where(num_valid > 0.0,
                     jnp.sum(per_batch) / jnp.maximum(num_valid, 1.0),
                     jnp.float32(0.0))


def _l2_loss_ref(flow_gt, flow_pred, flow_mask):
    """Pure-JAX reference mirroring the PyTorch module, for verification."""
    mask0 = flow_mask[:, 0, :, :].astype(jnp.float32)
    diff = flow_pred.astype(jnp.float32) - flow_gt.astype(jnp.float32)
    norm = jnp.sqrt(jnp.sum(diff * diff, axis=1))
    lossvalue = norm * mask0
    num_valid = jnp.sum(mask0, axis=(1, 2))
    valid = num_valid > 0.0
    per_batch = jnp.where(valid,
                          jnp.sum(lossvalue, axis=(1, 2)) /
                          jnp.where(valid, num_valid, 1.0),
                          0.0)
    nv = jnp.sum(valid.astype(jnp.float32))
    return jnp.where(nv > 0.0, jnp.sum(per_batch) / jnp.maximum(nv, 1.0), 0.0)


if __name__ == "__main__":
    key = jax.random.PRNGKey(0)
    k1, k2, k3, k4, k5, k6 = jax.random.split(key, 6)

    # Test 1: canonical small shape, f32, jitted.
    B, C, H, W = 2, 2, 16, 16
    flow_gt = jax.random.normal(k1, (B, C, H, W), dtype=jnp.float32)
    flow_pred = jax.random.normal(k2, (B, C, H, W), dtype=jnp.float32)
    mask_hw = (jax.random.uniform(k3, (B, 1, H, W)) > 0.3).astype(jnp.float32)
    flow_mask = jnp.tile(mask_hw, (1, C, 1, 1))
    out = jax.block_until_ready(jax.jit(l2_loss)(flow_gt, flow_pred, flow_mask))
    ref = _l2_loss_ref(flow_gt, flow_pred, flow_mask)
    assert jnp.allclose(out, ref, rtol=1e-5, atol=1e-5), (out, ref)

    # Test 2: unaligned H/W, C=3, forced multi-tile -> exercises the in-kernel
    # tail mask; batch 1 has an all-zero mask (num_valid_i == 0 path).
    B2, C2, H2, W2 = 2, 3, 13, 20
    gt2 = jax.random.normal(k4, (B2, C2, H2, W2), dtype=jnp.float32)
    pred2 = jax.random.normal(k5, (B2, C2, H2, W2), dtype=jnp.float32)
    m2 = (jax.random.uniform(k6, (B2, 1, H2, W2)) > 0.4).astype(jnp.float32)
    m2 = m2.at[1].set(0.0)
    mask2 = jnp.tile(m2, (1, C2, 1, 1))
    out2 = jax.block_until_ready(l2_loss(gt2, pred2, mask2, block_bytes=2048))
    ref2 = _l2_loss_ref(gt2, pred2, mask2)
    assert jnp.allclose(out2, ref2, rtol=1e-5, atol=1e-5), (out2, ref2)

    # Test 3: bf16 gt/pred (16-row sublane requirement), cast-in-VMEM path.
    gt3 = flow_gt.astype(jnp.bfloat16)
    pred3 = flow_pred.astype(jnp.bfloat16)
    out3 = jax.block_until_ready(l2_loss(gt3, pred3, flow_mask))
    ref3 = _l2_loss_ref(gt3, pred3, flow_mask)
    assert jnp.allclose(out3, ref3, rtol=1e-5, atol=1e-5), (out3, ref3)

    print("KERNEL_OK")
</pallas_src>

<mosaic_0001>
module attributes {stable_mosaic.version = 11 : i64} {
  func.func @_l2_kernel(%arg0: i32, %arg1: i32, %arg2: memref<1x2x16x16xf32, #tpu.memory_space<vmem>>, %arg3: memref<1x2x16x16xf32, #tpu.memory_space<vmem>>, %arg4: memref<1x1x16x16xf32, #tpu.memory_space<vmem>>, %arg5: memref<1x8x16xf32, #tpu.memory_space<vmem>>, %arg6: memref<1x8x16xf32, #tpu.memory_space<vmem>>) attributes {dimension_semantics = [#tpu.dimension_semantics<parallel>, #tpu.dimension_semantics<arbitrary>], iteration_bounds = array<i64: 2, 1>, scalar_prefetch = 0 : i64, scratch_operands = 0 : i64, tpu.core_type = #tpu.core_type<tc>, window_params = [{transform_indices = @transform_0, window_bounds = array<i64: 1, 2, 16, 16>}, {transform_indices = @transform_1, window_bounds = array<i64: 1, 2, 16, 16>}, {transform_indices = @transform_2, window_bounds = array<i64: 1, 1, 16, 16>}, {transform_indices = @transform_3, window_bounds = array<i64: 1, 8, 16>}, {transform_indices = @transform_4, window_bounds = array<i64: 1, 8, 16>}]} {
    %c0_i32 = arith.constant 0 : i32
    %0 = arith.cmpi eq, %arg1, %c0_i32 : i32
    %1 = arith.extui %0 : i1 to i32
    %c0_i32_0 = arith.constant 0 : i32
    %2 = arith.cmpi ne, %1, %c0_i32_0 : i32
    scf.if %2 {
      %cst_26 = arith.constant 0.000000e+00 : f32
      %30 = vector.broadcast %cst_26 : f32 to vector<8x16xf32>
      %c0_27 = arith.constant 0 : index
      %c0_28 = arith.constant 0 : index
      %c0_29 = arith.constant 0 : index
      %31 = vector.load %arg5[%c0_27, %c0_28, %c0_29] : memref<1x8x16xf32, #tpu.memory_space<vmem>>, vector<1x8x16xf32>
      %32 = vector.shape_cast %31 : vector<1x8x16xf32> to vector<8x16xf32>
      %33 = vector.shape_cast %30 : vector<8x16xf32> to vector<1x8x16xf32>
      tpu.vector_store %arg5[%c0_27, %c0_28, %c0_29], %33 {strides = array<i32>} : memref<1x8x16xf32, #tpu.memory_space<vmem>>, vector<1x8x16xf32>,
      %cst_30 = arith.constant 0.000000e+00 : f32
      %34 = vector.broadcast %cst_30 : f32 to vector<8x16xf32>
      %c0_31 = arith.constant 0 : index
      %c0_32 = arith.constant 0 : index
      %c0_33 = arith.constant 0 : index
      %35 = vector.load %arg6[%c0_31, %c0_32, %c0_33] : memref<1x8x16xf32, #tpu.memory_space<vmem>>, vector<1x8x16xf32>
      %36 = vector.shape_cast %35 : vector<1x8x16xf32> to vector<8x16xf32>
      %37 = vector.shape_cast %34 : vector<8x16xf32> to vector<1x8x16xf32>
      tpu.vector_store %arg6[%c0_31, %c0_32, %c0_33], %37 {strides = array<i32>} : memref<1x8x16xf32, #tpu.memory_space<vmem>>, vector<1x8x16xf32>,
    } else {
    }
    %c0 = arith.constant 0 : index
    %c0_1 = arith.constant 0 : index
    %c0_2 = arith.constant 0 : index
    %c0_3 = arith.constant 0 : index
    %3 = vector.load %arg2[%c0, %c0_1, %c0_2, %c0_3] : memref<1x2x16x16xf32, #tpu.memory_space<vmem>>, vector<1x2x16x16xf32>
    %4 = vector.shape_cast %3 : vector<1x2x16x16xf32> to vector<2x16x16xf32>
    %c0_4 = arith.constant 0 : index
    %c0_5 = arith.constant 0 : index
    %c0_6 = arith.constant 0 : index
    %c0_7 = arith.constant 0 : index
    %5 = vector.load %arg3[%c0_4, %c0_5, %c0_6, %c0_7] : memref<1x2x16x16xf32, #tpu.memory_space<vmem>>, vector<1x2x16x16xf32>
    %6 = vector.shape_cast %5 : vector<1x2x16x16xf32> to vector<2x16x16xf32>
    %c0_8 = arith.constant 0 : index
    %c0_9 = arith.constant 0 : index
    %c0_10 = arith.constant 0 : index
    %c0_11 = arith.constant 0 : index
    %7 = vector.load %arg4[%c0_8, %c0_9, %c0_10, %c0_11] : memref<1x1x16x16xf32, #tpu.memory_space<vmem>>, vector<1x1x16x16xf32>
    %8 = vector.shape_cast %7 : vector<1x1x16x16xf32> to vector<16x16xf32>
    %9 = arith.subf %6, %4 : vector<2x16x16xf32>
    %10 = arith.mulf %9, %9 : vector<2x16x16xf32>
    %cst = arith.constant dense<0.000000e+00> : vector<16x16xf32>
    %11 = vector.multi_reduction <add>, %10, %cst [0] : vector<2x16x16xf32> to vector<16x16xf32>
    %12 = math.sqrt %11 : vector<16x16xf32>
    %13 = arith.mulf %12, %8 : vector<16x16xf32>
    %c0_12 = arith.constant 0 : index
    %c0_13 = arith.constant 0 : index
    %c0_14 = arith.constant 0 : index
    %14 = vector.load %arg5[%c0_12, %c0_13, %c0_14] : memref<1x8x16xf32, #tpu.memory_space<vmem>>, vector<1x8x16xf32>
    %15 = vector.shape_cast %14 : vector<1x8x16xf32> to vector<8x16xf32>
    %16 = vector.shape_cast %13 : vector<16x16xf32> to vector<2x8x16xf32>
    %cst_15 = arith.constant dense<0.000000e+00> : vector<8x16xf32>
    %17 = vector.multi_reduction <add>, %16, %cst_15 [0] : vector<2x8x16xf32> to vector<8x16xf32>
    %18 = arith.addf %15, %17 : vector<8x16xf32>
    %c0_16 = arith.constant 0 : index
    %c0_17 = arith.constant 0 : index
    %c0_18 = arith.constant 0 : index
    %19 = vector.load %arg5[%c0_16, %c0_17, %c0_18] : memref<1x8x16xf32, #tpu.memory_space<vmem>>, vector<1x8x16xf32>
    %20 = vector.shape_cast %19 : vector<1x8x16xf32> to vector<8x16xf32>
    %21 = vector.shape_cast %18 : vector<8x16xf32> to vector<1x8x16xf32>
    tpu.vector_store %arg5[%c0_16, %c0_17, %c0_18], %21 {strides = array<i32>} : memref<1x8x16xf32, #tpu.memory_space<vmem>>, vector<1x8x16xf32>,
    %c0_19 = arith.constant 0 : index
    %c0_20 = arith.constant 0 : index
    %c0_21 = arith.constant 0 : index
    %22 = vector.load %arg6[%c0_19, %c0_20, %c0_21] : memref<1x8x16xf32, #tpu.memory_space<vmem>>, vector<1x8x16xf32>
    %23 = vector.shape_cast %22 : vector<1x8x16xf32> to vector<8x16xf32>
    %24 = vector.shape_cast %8 : vector<16x16xf32> to vector<2x8x16xf32>
    %cst_22 = arith.constant dense<0.000000e+00> : vector<8x16xf32>
    %25 = vector.multi_reduction <add>, %24, %cst_22 [0] : vector<2x8x16xf32> to vector<8x16xf32>
    %26 = arith.addf %23, %25 : vector<8x16xf32>
    %c0_23 = arith.constant 0 : index
    %c0_24 = arith.constant 0 : index
    %c0_25 = arith.constant 0 : index
    %27 = vector.load %arg6[%c0_23, %c0_24, %c0_25] : memref<1x8x16xf32, #tpu.memory_space<vmem>>, vector<1x8x16xf32>
    %28 = vector.shape_cast %27 : vector<1x8x16xf32> to vector<8x16xf32>
    %29 = vector.shape_cast %26 : vector<8x16xf32> to vector<1x8x16xf32>
    tpu.vector_store %arg6[%c0_23, %c0_24, %c0_25], %29 {strides = array<i32>} : memref<1x8x16xf32, #tpu.memory_space<vmem>>, vector<1x8x16xf32>,
    return
  }
  func.func @transform_0(%arg0: i32, %arg1: i32) -> (i32, i32, i32, i32) {
    %c0_i32 = arith.constant 0 : i32
    %c0_i32_0 = arith.constant 0 : i32
    %c0_i32_1 = arith.constant 0 : i32
    return %arg0, %c0_i32, %arg1, %c0_i32_0 : i32, i32, i32, i32
  }
  func.func @transform_1(%arg0: i32, %arg1: i32) -> (i32, i32, i32, i32) {
    %c0_i32 = arith.constant 0 : i32
    %c0_i32_0 = arith.constant 0 : i32
    %c0_i32_1 = arith.constant 0 : i32
    return %arg0, %c0_i32, %arg1, %c0_i32_0 : i32, i32, i32, i32
  }
  func.func @transform_2(%arg0: i32, %arg1: i32) -> (i32, i32, i32, i32) {
    %c0_i32 = arith.constant 0 : i32
    %c0_i32_0 = arith.constant 0 : i32
    %c0_i32_1 = arith.constant 0 : i32
    return %arg0, %c0_i32, %arg1, %c0_i32_0 : i32, i32, i32, i32
  }
  func.func @transform_3(%arg0: i32, %arg1: i32) -> (i32, i32, i32) {
    %c0_i32 = arith.constant 0 : i32
    %c0_i32_0 = arith.constant 0 : i32
    %c0_i32_1 = arith.constant 0 : i32
    return %arg0, %c0_i32, %c0_i32_0 : i32, i32, i32
  }
  func.func @transform_4(%arg0: i32, %arg1: i32) -> (i32, i32, i32) {
    %c0_i32 = arith.constant 0 : i32
    %c0_i32_0 = arith.constant 0 : i32
    %c0_i32_1 = arith.constant 0 : i32
    return %arg0, %c0_i32, %c0_i32_0 : i32, i32, i32
  }
}

</mosaic_0001>

<llo_original>
// kernel: l2_loss.1
$region0: #{l2_loss.1}
  #allocation0 [shape = 'u32[]', space=smem, size = 0x4, offset = 0x4, fixed_abs, tag = 'smem constant byte address 0x4 - core index']
  #allocation1 [shape = 'u32[72,128]{1,0:T(1,128)}', space=vmem, size = 0x9000, scoped, tag = 'internal scratch']
  %s0 = inlined_call_operand.hbm [shape: f32[2,2,16,16], index: 0, kind: input, shape index: {}]
  %s1 = inlined_call_operand.hbm [shape: f32[2,2,16,16], index: 1, kind: input, shape index: {}]
  %s2 = inlined_call_operand.hbm [shape: f32[2,2,16,16], index: 2, kind: input, shape index: {}]
  %s3 = inlined_call_operand.vmem [shape: f32[2,8,16], index: 3, kind: output, shape index: {0}]
  %s4 = inlined_call_operand.vmem [shape: f32[2,8,16], index: 4, kind: output, shape index: {1}]
  %5 = xla_tuple %s3, %s4
  %s6 = sld [smem:[#allocation0]]
  $region69: #{l2_loss.1} parent=0
    _
  %s8 = ssub.s32 1, %s6
  %s9 = scalar_select 0, %s8, %s6
  $region1: #{l2_loss.1} parent=0
    #allocation2 [shape = 'u8[32768]{0}', space=vmem, size = 0x8000, scoped, tag = 'input window, operand 0']
    #allocation3 [shape = 's32[2]{0}', space=sflag, size = 0x8, scoped, tag = 'scoped memory for l2_loss.1']
    #allocation4 [shape = 'u8[32768]{0}', space=vmem, size = 0x8000, scoped, tag = 'input window, operand 1']
    #allocation5 [shape = 's32[2]{0}', space=sflag, size = 0x8, scoped, tag = 'scoped memory for l2_loss.1']
    #allocation6 [shape = 'u8[16384]{0}', space=vmem, size = 0x4000, scoped, tag = 'input window, operand 2']
    %10 = vsyncpa [#allocation3], 0
    %s11 = scalar_lea.sflag [#allocation3], 1
    %12 = vsyncpa %s11, 0
    %13 = vsyncpa [#allocation5], 0
    %s14 = scalar_lea.sflag [#allocation5], 1
    %15 = vsyncpa %s14, 0
    loop: start=0, step=1, limit=4
    $region2: #{l2_loss.1} parent=1 // loop_pre_header
      _
    $region3: #{l2_loss.1} parent=1 // loop_header
      %s17 = sphi 0, %s21
      %p18 = scmp.ge.s32.totalorder %s17, 4
      %s24 = sphi 0, %s36
      %s25 = sphi 0, %s32
      %s26 = sphi 0, %s24
      %s27 = sphi 0, %s25
      %s28 = sphi 0, %s26
      %s29 = sphi 0, %s27
      %s41 = sphi 0, %s43
      %s44 = sphi 0, %s41
      %s45 = sphi 0, %s44
      %s61 = sphi 0, %s45
      %s69 = sphi 0, %s71
      %s72 = sphi 0, %s69
      %s73 = sphi 0, %s72
      %s89 = sphi 0, %s73
      %s97 = sphi 0, %s99
      %s100 = sphi 0, %s97
      %s101 = sphi 0, %s100
      %s117 = sphi 0, %s101
      %s123 = sphi 0, %s125
      %s126 = sphi 0, %s123
      %s127 = sphi 0, %s126
      %s143 = sphi 0, %s127
      %s149 = sphi 0, %s151
      %s152 = sphi 0, %s149
      %s153 = sphi 0, %s152
      %s169 = sphi 0, %s153
    $region4: #{l2_loss.1} parent=1 // loop_header_branch
      %20 = sbr.rel (%p18) target = $region8
    $region5: #{l2_loss.1} parent=1 // loop_body
      %s22 = ssub.s32 %s17, 1
      %s23 = ssub.s32 %s17, 2
      %s30 = sadd.s32 1, %s25
      %p31 = scmp.ge.s32.totalorder %s30, 1
      %s32 = scalar_select %p31, 0, %s30
      %s33 = sadd.s32 1, %s24
      %s34 = scalar_select %p31, %s33, %s24
      %p35 = scmp.ge.s32.totalorder %s34, 2
      %s36 = scalar_select %p35, 0, %s34
      %s37 = ssub.s32 %s24, %s36
      %s38 = ssub.s32 %s25, %s32
      %s39 = sor.u32 %s37, %s38
      %p40 = scmp.eq.s32.totalorder %s39, 0
      %s42 = sadd.s32 %s41, 1
      %s43 = scalar_select %p40, %s41, %s42
      %p46 = pneg %p40
      %p47 = scmp.eq.s32.totalorder %s17, 1
      %p48 = por %p46, %p47
      %p49 = scmp.ne.s32.totalorder %s41, %s44
      %p50 = scmp.eq.s32.totalorder %s17, 0
      %p51 = por %p49, %p50
      %p52 = scmp.ne.s32.totalorder %s41, %s44
      %p53 = scmp.eq.s32.totalorder %s22, 1
      %p54 = por %p52, %p53
      %p55 = scmp.ne.s32.totalorder %s44, %s45
      %p56 = scmp.eq.s32.totalorder %s22, 0
      %p57 = por %p55, %p56
      %p58 = scmp.ne.s32.totalorder %s44, %s45
      %p59 = scmp.eq.s32.totalorder %s23, 1
      %p60 = por %p58, %p59
      %p62 = scmp.ne.s32.totalorder %s45, %s61
      %p63 = scmp.eq.s32.totalorder %s23, 0
      %p64 = por %p62, %p63
      %s65 = ssub.s32 %s24, %s36
      %s66 = ssub.s32 %s25, %s32
      %s67 = sor.u32 %s65, %s66
      %p68 = scmp.eq.s32.totalorder %s67, 0
      %s70 = sadd.s32 %s69, 1
      %s71 = scalar_select %p68, %s69, %s70
      %p74 = pneg %p68
      %p75 = scmp.eq.s32.totalorder %s17, 1
      %p76 = por %p74, %p75
      %p77 = scmp.ne.s32.totalorder %s69, %s72
      %p78 = scmp.eq.s32.totalorder %s17, 0
      %p79 = por %p77, %p78
      %p80 = scmp.ne.s32.totalorder %s69, %s72
      %p81 = scmp.eq.s32.totalorder %s22, 1
      %p82 = por %p80, %p81
      %p83 = scmp.ne.s32.totalorder %s72, %s73
      %p84 = scmp.eq.s32.totalorder %s22, 0
      %p85 = por %p83, %p84
      %p86 = scmp.ne.s32.totalorder %s72, %s73
      %p87 = scmp.eq.s32.totalorder %s23, 1
      %p88 = por %p86, %p87
      %p90 = scmp.ne.s32.totalorder %s73, %s89
      %p91 = scmp.eq.s32.totalorder %s23, 0
      %p92 = por %p90, %p91
      %s93 = ssub.s32 %s24, %s36
      %s94 = ssub.s32 %s25, %s32
      %s95 = sor.u32 %s93, %s94
      %p96 = scmp.eq.s32.totalorder %s95, 0
      %s98 = sadd.s32 %s97, 1
      %s99 = scalar_select %p96, %s97, %s98
      %p102 = pneg %p96
      %p103 = scmp.eq.s32.totalorder %s17, 1
      %p104 = por %p102, %p103
      %p105 = scmp.ne.s32.totalorder %s97, %s100
      %p106 = scmp.eq.s32.totalorder %s17, 0
      %p107 = por %p105, %p106
      %p108 = scmp.ne.s32.totalorder %s97, %s100
      %p109 = scmp.eq.s32.totalorder %s22, 1
      %p110 = por %p108, %p109
      %p111 = scmp.ne.s32.totalorder %s100, %s101
      %p112 = scmp.eq.s32.totalorder %s22, 0
      %p113 = por %p111, %p112
      %p114 = scmp.ne.s32.totalorder %s100, %s101
      %p115 = scmp.eq.s32.totalorder %s23, 1
      %p116 = por %p114, %p115
      %p118 = scmp.ne.s32.totalorder %s101, %s117
      %p119 = scmp.eq.s32.totalorder %s23, 0
      %p120 = por %p118, %p119
      %s121 = ssub.s32 %s24, %s36
      %p122 = scmp.eq.s32.totalorder %s121, 0
      %s124 = sadd.s32 %s123, 1
      %s125 = scalar_select %p122, %s123, %s124
      %p128 = pneg %p122
      %p129 = scmp.eq.s32.totalorder %s17, 1
      %p130 = por %p128, %p129
      %p131 = scmp.ne.s32.totalorder %s123, %s126
      %p132 = scmp.eq.s32.totalorder %s17, 0
      %p133 = por %p131, %p132
      %p134 = scmp.ne.s32.totalorder %s123, %s126
      %p135 = scmp.eq.s32.totalorder %s22, 1
      %p136 = por %p134, %p135
      %p137 = scmp.ne.s32.totalorder %s126, %s127
      %p138 = scmp.eq.s32.totalorder %s22, 0
      %p139 = por %p137, %p138
      %p140 = scmp.ne.s32.totalorder %s126, %s127
      %p141 = scmp.eq.s32.totalorder %s23, 1
      %p142 = por %p140, %p141
      %p144 = scmp.ne.s32.totalorder %s127, %s143
      %p145 = scmp.eq.s32.totalorder %s23, 0
      %p146 = por %p144, %p145
      %s147 = ssub.s32 %s24, %s36
      %p148 = scmp.eq.s32.totalorder %s147, 0
      %s150 = sadd.s32 %s149, 1
      %s151 = scalar_select %p148, %s149, %s150
      %p154 = pneg %p148
      %p155 = scmp.eq.s32.totalorder %s17, 1
      %p156 = por %p154, %p155
      %p157 = scmp.ne.s32.totalorder %s149, %s152
      %p158 = scmp.eq.s32.totalorder %s17, 0
      %p159 = por %p157, %p158
      %p160 = scmp.ne.s32.totalorder %s149, %s152
      %p161 = scmp.eq.s32.totalorder %s22, 1
      %p162 = por %p160, %p161
      %p163 = scmp.ne.s32.totalorder %s152, %s153
      %p164 = scmp.eq.s32.totalorder %s22, 0
      %p165 = por %p163, %p164
      %p166 = scmp.ne.s32.totalorder %s152, %s153
      %p167 = scmp.eq.s32.totalorder %s23, 1
      %p168 = por %p166, %p167
      %p170 = scmp.ne.s32.totalorder %s153, %s169
      %p171 = scmp.eq.s32.totalorder %s23, 0
      %p172 = por %p170, %p171
      %p173 = scmp.le.s32.totalorder 1, %s17
      %p174 = scmp.lt.s32.totalorder %s17, 3
      %p175 = pnand %p173, %p174
      %p176 = pneg %p175
      // Predicated region
      $region9: #{l2_loss.1} parent=5 // pred_check
        _
      $region10: #{l2_loss.1} parent=5 // pred_check_branch
        %178 = sbr.rel (%p175) target = $region12
      $region11: #{l2_loss.1} parent=5 // pred_region
        %s179 = ssub.s32 %s17, 1
      $region12: #{l2_loss.1} parent=5 // pred_fallthru
        _
      %p180 = scmp.lt.s32.totalorder %s17, 2
      // Predicated region
      $region13: #{l2_loss.1} parent=5 // pred_check
        %p181 = pneg %p180
      $region14: #{l2_loss.1} parent=5 // pred_check_branch
        %183 = sbr.rel (%p181) target = $region16
      $region15: #{l2_loss.1} parent=5 // pred_region
        // Predicated region
        $region17: #{l2_loss.1} parent=15 // pred_check
          %p184 = pneg %p51
        $region18: #{l2_loss.1} parent=15 // pred_check_branch
          %186 = sbr.rel (%p184) target = $region20
        $region19: #{l2_loss.1} parent=15 // pred_region
          %s187 = sand.u32 %s41, 1
          %s188 = scalar_lea.sflag [#allocation3], %s187
          %s189 = sand.u32 %s41, 1
          %s190 = smul.addr %s189, 32
          %s191 = scalar_lea.vmem [#allocation2], %s190
          %s192 = smul.u32 2, %s25
          %194 = vsyncadd %s188, 0
          %s195 = smul.addr %s24, 4
          %s196 = sadd.s32 %s192, %s195
          %s197 = smul.addr %s196, 8
          %s198 = scalar_lea.hbm %s0, %s197
          %s199 = sshll.u32 %s198, 4
          %s200 = int_to_ptr.hbm [resolvable:$true] %s199
          %s201 = sshll.u32 %s191, 4
          %s202 = int_to_ptr.vmem [resolvable:$true] %s201
          %207 = dma.hbm_to_vmem [thread:$0]  %s200, 512, %s202, %s188, 128, 128, 8
        $region20: #{l2_loss.1} parent=15 // pred_fallthru
          _
        // Predicated region
        $region21: #{l2_loss.1} parent=15 // pred_check
          %p208 = pneg %p79
        $region22: #{l2_loss.1} parent=15 // pred_check_branch
          %210 = sbr.rel (%p208) target = $region24
        $region23: #{l2_loss.1} parent=15 // pred_region
          %s211 = sand.u32 %s17, 1
          %s212 = scalar_lea.sflag [#allocation5], %s211
          %s213 = sand.u32 %s69, 1
          %s214 = smul.addr %s213, 32
          %s215 = scalar_lea.vmem [#allocation4], %s214
          %s216 = smul.u32 2, %s25
          %218 = vsyncadd %s212, 0
          %s219 = smul.addr %s24, 4
          %s220 = sadd.s32 %s216, %s219
          %s221 = smul.addr %s220, 8
          %s222 = scalar_lea.hbm %s1, %s221
          %s223 = sshll.u32 %s222, 4
          %s224 = int_to_ptr.hbm [resolvable:$true] %s223
          %s225 = sshll.u32 %s215, 4
          %s226 = int_to_ptr.vmem [resolvable:$true] %s225
          %231 = dma.hbm_to_vmem [thread:$0]  %s224, 512, %s226, %s212, 128, 128, 8
        $region24: #{l2_loss.1} parent=15 // pred_fallthru
          _
        // Predicated region
        $region25: #{l2_loss.1} parent=15 // pred_check
          %p232 = pneg %p107
        $region26: #{l2_loss.1} parent=15 // pred_check_branch
          %234 = sbr.rel (%p232) target = $region28
        $region27: #{l2_loss.1} parent=15 // pred_region
          %s235 = sand.u32 %s17, 1
          %s236 = scalar_lea.sflag [#allocation5], %s235
          %s237 = sand.u32 %s97, 1
          %s238 = smul.addr %s237, 16
          %s239 = scalar_lea.vmem [#allocation6], %s238
          %s240 = smul.u32 2, %s25
          %242 = vsyncadd %s236, 0
          %s243 = smul.addr %s24, 4
          %s244 = sadd.s32 %s240, %s243
          %s245 = smul.addr %s244, 8
          %s246 = scalar_lea.hbm %s2, %s245
          %s247 = sshll.u32 %s246, 4
          %s248 = int_to_ptr.hbm [resolvable:$true] %s247
          %s249 = sshll.u32 %s239, 4
          %s250 = int_to_ptr.vmem [resolvable:$true] %s249
          %255 = dma.hbm_to_vmem [thread:$0]  %s248, 256, %s250, %s236, 128, 128, 8
        $region28: #{l2_loss.1} parent=15 // pred_fallthru
          _
      $region16: #{l2_loss.1} parent=5 // pred_fallthru
        _
      %p256 = scmp.le.s32.totalorder 1, %s17
      %p257 = scmp.lt.s32.totalorder %s17, 3
      %p258 = pnand %p256, %p257
      %p259 = pneg %p258
      // Predicated region
      $region29: #{l2_loss.1} parent=5 // pred_check
        _
      $region30: #{l2_loss.1} parent=5 // pred_check_branch
        %261 = sbr.rel (%p258) target = $region32
      $region31: #{l2_loss.1} parent=5 // pred_region
        %s262 = ssub.s32 %s17, 1
        %s263 = sand.u32 %s44, 1
        %s264 = scalar_lea.sflag [#allocation3], %s263
        %s265 = sand.u32 %s44, 1
        %s266 = smul.addr %s265, 32
        %s267 = scalar_lea.vmem [#allocation2], %s266
        // Predicated region
        $region33: #{l2_loss.1} parent=31 // pred_check
          %p268 = pneg %p57
        $region34: #{l2_loss.1} parent=31 // pred_check_branch
          %270 = sbr.rel (%p268) target = $region36
        $region35: #{l2_loss.1} parent=31 // pred_region
          %272 = dma.done %s264, 512
        $region36: #{l2_loss.1} parent=31 // pred_fallthru
          _
        %s273 = sand.u32 %s22, 1
        %s274 = scalar_lea.sflag [#allocation5], %s273
        %s275 = sand.u32 %s72, 1
        %s276 = smul.addr %s275, 32
        %s277 = scalar_lea.vmem [#allocation4], %s276
        // Predicated region
        $region37: #{l2_loss.1} parent=31 // pred_check
          %p278 = pneg %p85
        $region38: #{l2_loss.1} parent=31 // pred_check_branch
          %280 = sbr.rel (%p278) target = $region40
        $region39: #{l2_loss.1} parent=31 // pred_region
          %282 = dma.done %s274, 512
        $region40: #{l2_loss.1} parent=31 // pred_fallthru
          _
        %s283 = sand.u32 %s22, 1
        %s284 = scalar_lea.sflag [#allocation5], %s283
        %s285 = sand.u32 %s100, 1
        %s286 = smul.addr %s285, 16
        %s287 = scalar_lea.vmem [#allocation6], %s286
        // Predicated region
        $region41: #{l2_loss.1} parent=31 // pred_check
          %p288 = pneg %p113
        $region42: #{l2_loss.1} parent=31 // pred_check_branch
          %290 = sbr.rel (%p288) target = $region44
        $region43: #{l2_loss.1} parent=31 // pred_region
          %292 = dma.done %s284, 256
        $region44: #{l2_loss.1} parent=31 // pred_fallthru
          _
        %s293 = sand.u32 %s44, 1
        %s294 = scalar_lea.sflag [#allocation3], %s293
        %s295 = sand.u32 %s44, 1
        %s296 = smul.addr %s295, 32
        %s297 = scalar_lea.vmem [#allocation2], %s296
        %p298 = pneg %p57
        %p299 = pneg %p54
        %s300 = sand.u32 %s22, 1
        %s301 = scalar_lea.sflag [#allocation5], %s300
        %s302 = sand.u32 %s72, 1
        %s303 = smul.addr %s302, 32
        %s304 = scalar_lea.vmem [#allocation4], %s303
        %p305 = pneg %p85
        %p306 = pneg %p82
        %s307 = sand.u32 %s22, 1
        %s308 = scalar_lea.sflag [#allocation5], %s307
        %s309 = sand.u32 %s100, 1
        %s310 = smul.addr %s309, 16
        %s311 = scalar_lea.vmem [#allocation6], %s310
        %p312 = pneg %p113
        %p313 = pneg %p110
        %p314 = pneg %p139
        %p315 = pneg %p136
        %p316 = scmp.lt.s32.totalorder %s26, 1
        %s317 = scalar_select %p316, %s26, 1
        %s318 = smul.addr %s317, 8
        %s319 = scalar_lea.vmem %s3, %s318
        %p320 = pneg %p165
        %p321 = pneg %p162
        %p322 = scmp.lt.s32.totalorder %s26, 1
        %s323 = scalar_select %p322, %s26, 1
        %s324 = smul.addr %s323, 8
        %s325 = scalar_lea.vmem %s4, %s324
        %s326 = smul.u32 2, %s27
        %s327 = smul.u32 2, %s27
        %s328 = smul.u32 2, %s27
        %p329 = scmp.lt.s32.totalorder %s26, 1
        %s330 = scalar_select %p329, %s26, 1
        %s331 = smul.addr %s330, 8
        %s332 = scalar_lea.vmem %s3, %s331
        %p333 = scmp.lt.s32.totalorder %s26, 1
        %s334 = scalar_select %p333, %s26, 1
        %s335 = smul.addr %s334, 8
        %s336 = scalar_lea.vmem %s4, %s335
        %p337 = scmp.eq.s32.totalorder %s27, 0
        // Predicated region
        $region45: #{l2_loss.1} parent=31 // pred_check
          %p338 = pneg %p337
        $region46: #{l2_loss.1} parent=31 // pred_check_branch
          %340 = sbr.rel (%p338) target = $region48
        $region47: #{l2_loss.1} parent=31 // pred_region
          %vm341 = vcmask 130048
          %342 = vst.msk [vmem:[%s332] sm:$0xff] %vm341, 0.0
          %343 = vst.msk [vmem:[%s336] sm:$0xff] %vm341, 0.0
        $region48: #{l2_loss.1} parent=31 // pred_fallthru
          _
        %v344 = vld [vmem:[%s267] sm:$0xff]
        %v345 = vld [vmem:[%s267 + $0x8] sm:$0xff]
        %v346 = vld [vmem:[%s267 + $0x10] sm:$0xff]
        %v347 = vld [vmem:[%s267 + $0x18] sm:$0xff]
        %v348 = vld [vmem:[%s277] sm:$0xff]
        %v349 = vld [vmem:[%s277 + $0x8] sm:$0xff]
        %v350 = vld [vmem:[%s277 + $0x10] sm:$0xff]
        %v351 = vld [vmem:[%s277 + $0x18] sm:$0xff]
        %v352 = vld [vmem:[%s287] sm:$0xff]
        %v353 = vld [vmem:[%s287 + $0x8] sm:$0xff]
        %v354 = vsub.f32 %v348, %v344
        %v355 = vsub.f32 %v349, %v345
        %v356 = vsub.f32 %v350, %v346
        %v357 = vsub.f32 %v351, %v347
        %v358 = vmul.f32 %v354, %v354
        %v359 = vmul.f32 %v355, %v355
        %v360 = vmul.f32 %v356, %v356
        %v361 = vmul.f32 %v357, %v357
        %vm362 = vcmask 130048
        %v363 = vsel %vm362, %v358, 0.0
        %v364 = vsel %vm362, %v360, 0.0
        %v365 = vadd.f32 %v363, %v364
        %v366 = vsel %vm362, %v359, 0.0
        %v367 = vsel %vm362, %v361, 0.0
        %v368 = vadd.f32 %v366, %v367
        %v369 = vrsqrt.pop %v365
        %v370 = vmul.f32 %v369, %v365
        %v371 = vmul.f32 %v370, %v369
        %v372 = vmul.f32 0.5, %v371
        %v373 = vsub.f32 1.5, %v372
        %v374 = vmul.f32 %v369, %v373
        %v375 = vmul.f32 %v365, %v374
        %vm376 = vcmp.eq.f32.partialorder %v365, inf
        %v377 = vsel %vm376, %v365, %v375
        %vm378 = vcmp.eq.f32.partialorder %v365, 0.0
        %v379 = vand.u32 %v365, 2147483648
        %v380 = vsel %vm378, %v379, %v377
        %v381 = vrsqrt.pop %v368
        %v382 = vmul.f32 %v381, %v368
        %v383 = vmul.f32 %v382, %v381
        %v384 = vmul.f32 0.5, %v383
        %v385 = vsub.f32 1.5, %v384
        %v386 = vmul.f32 %v381, %v385
        %v387 = vmul.f32 %v368, %v386
        %vm388 = vcmp.eq.f32.partialorder %v368, inf
        %v389 = vsel %vm388, %v368, %v387
        %vm390 = vcmp.eq.f32.partialorder %v368, 0.0
        %v391 = vand.u32 %v368, 2147483648
        %v392 = vsel %vm390, %v391, %v389
        %v393 = vmul.f32 %v380, %v352
        %v394 = vmul.f32 %v392, %v353
        %v395 = vld [vmem:[%s332] sm:$0xff]
        %v396 = vsel %vm362, %v393, 0.0
        %v397 = vsel %vm362, %v394, 0.0
        %v398 = vadd.f32 %v396, %v397
        %v399 = vadd.f32 %v395, %v398
        %400 = vst.msk [vmem:[%s332] sm:$0xff] %vm362, %v399
        %v401 = vld [vmem:[%s336] sm:$0xff]
        %v402 = vsel %vm362, %v352, 0.0
        %v403 = vsel %vm362, %v353, 0.0
        %v404 = vadd.f32 %v402, %v403
        %v405 = vadd.f32 %v401, %v404
        %406 = vst.msk [vmem:[%s336] sm:$0xff] %vm362, %v405
        %p407 = scmp.lt.s32.totalorder %s26, 1
        %s408 = scalar_select %p407, %s26, 1
        %s409 = smul.addr %s408, 8
        %s410 = scalar_lea.vmem %s3, %s409
        %p411 = scmp.lt.s32.totalorder %s26, 1
        %s412 = scalar_select %p411, %s26, 1
        %s413 = smul.addr %s412, 8
        %s414 = scalar_lea.vmem %s4, %s413
        // Predicated region
        $region49: #{l2_loss.1} parent=31 // pred_check
          %p415 = pneg %p136
        $region50: #{l2_loss.1} parent=31 // pred_check_branch
          %417 = sbr.rel (%p415) target = $region52
        $region51: #{l2_loss.1} parent=31 // pred_region
          _
        $region52: #{l2_loss.1} parent=31 // pred_fallthru
          _
        // Predicated region
        $region53: #{l2_loss.1} parent=31 // pred_check
          %p418 = pneg %p162
        $region54: #{l2_loss.1} parent=31 // pred_check_branch
          %420 = sbr.rel (%p418) target = $region56
        $region55: #{l2_loss.1} parent=31 // pred_region
          _
        $region56: #{l2_loss.1} parent=31 // pred_fallthru
          _
      $region32: #{l2_loss.1} parent=5 // pred_fallthru
        _
      %p421 = scmp.le.s32.totalorder 2, %s17
      // Predicated region
      $region57: #{l2_loss.1} parent=5 // pred_check
        %p422 = pneg %p421
      $region58: #{l2_loss.1} parent=5 // pred_check_branch
        %424 = sbr.rel (%p422) target = $region60
      $region59: #{l2_loss.1} parent=5 // pred_region
        %s425 = ssub.s32 %s17, 2
        // Predicated region
        $region61: #{l2_loss.1} parent=59 // pred_check
          %p426 = pneg %p142
        $region62: #{l2_loss.1} parent=59 // pred_check_branch
          %428 = sbr.rel (%p426) target = $region64
        $region63: #{l2_loss.1} parent=59 // pred_region
          %p429 = scmp.lt.s32.totalorder %s28, 1
          %s430 = scalar_select %p429, %s28, 1
          %s431 = smul.addr %s430, 8
          %s432 = scalar_lea.vmem %s3, %s431
        $region64: #{l2_loss.1} parent=59 // pred_fallthru
          _
        // Predicated region
        $region65: #{l2_loss.1} parent=59 // pred_check
          %p433 = pneg %p168
        $region66: #{l2_loss.1} parent=59 // pred_check_branch
          %435 = sbr.rel (%p433) target = $region68
        $region67: #{l2_loss.1} parent=59 // pred_region
          %p436 = scmp.lt.s32.totalorder %s28, 1
          %s437 = scalar_select %p436, %s28, 1
          %s438 = smul.addr %s437, 8
          %s439 = scalar_lea.vmem %s4, %s438
        $region68: #{l2_loss.1} parent=59 // pred_fallthru
          _
      $region60: #{l2_loss.1} parent=5 // pred_fallthru
        _
    $region6: #{l2_loss.1} parent=1 // loop_footer
      %s21 = sadd.s32 1, %s17
    $region7: #{l2_loss.1} parent=1 // loop_footer_branch
      %16 = sbr.rel target = $region3
    $region8: #{l2_loss.1} parent=1 // loop_exit
      _
    %440 = vsyncpa [#allocation3], 1
    %s441 = scalar_lea.sflag [#allocation3], 1
    %442 = vsyncpa %s441, 1
    %443 = vsyncpa [#allocation5], 1
    %s444 = scalar_lea.sflag [#allocation5], 1
    %445 = vsyncpa %s444, 1

</llo_original>
